<compile_context>
chip_gen: v6e
topology: v6e:2x2x1
jax: 0.10.0
libtpu: 0.0.40
codegen_flags: <defaults>
</compile_context>

<pallas_src>
import jax
import jax.numpy as jnp
from jax.experimental import pallas as pl
from jax.experimental.pallas import tpu as pltpu


def _round_up(x, m):
    return ((x + m - 1) // m) * m


_TILE_CANDIDATES = (2048, 1024, 512, 256, 128, 64, 32, 16, 8)


def _pick_row_tile(n, adj_row_bytes, out_row_bytes, resident_bytes,
                   budget=40 * 1024 * 1024):
    """Largest sublane-aligned row tile dividing N that fits the VMEM budget.

    Budget accounts for: double-buffered adj row tile, double-buffered output
    tile (f32), plus the resident support block.
    """
    candidates = [t for t in _TILE_CANDIDATES if n % t == 0]
    if not candidates:
        return n  # tiny / odd N: single full-extent block (allowed by Pallas)
    for tm in candidates:
        need = 2 * tm * adj_row_bytes + 2 * tm * out_row_bytes + resident_bytes
        if need <= budget:
            return tm
    return candidates[-1]


# ---------------------- prologue: support = X @ W + b ----------------------

def _support_kernel(x_ref, w_ref, b_ref, o_ref):
    acc = jnp.dot(x_ref[...], w_ref[...], preferred_element_type=jnp.float32)
    o_ref[...] = (acc + b_ref[...]).astype(o_ref.dtype)


def _compute_support(x, w_pad, b_pad, out_dtype):
    n, cin = x.shape
    cout_pad = w_pad.shape[1]
    # x tile + resident W/b + out tile are tiny; a simple divisor pick suffices.
    tm = next((t for t in _TILE_CANDIDATES if n % t == 0), n)
    return pl.pallas_call(
        _support_kernel,
        out_shape=jax.ShapeDtypeStruct((n, cout_pad), out_dtype),
        grid_spec=pltpu.PrefetchScalarGridSpec(
            num_scalar_prefetch=0,
            grid=(n // tm,),
            in_specs=[
                pl.BlockSpec((tm, cin), lambda r: (r, 0)),
                pl.BlockSpec((cin, cout_pad), lambda r: (0, 0)),
                pl.BlockSpec((1, cout_pad), lambda r: (0, 0)),
            ],
            out_specs=pl.BlockSpec((tm, cout_pad), lambda r: (r, 0)),
        ),
        compiler_params=pltpu.CompilerParams(
            dimension_semantics=("parallel",),
        ),
    )(x, w_pad, b_pad)


# ------ main kernel: out = leaky_relu(sum_i att[i] * adj[i] @ support) ------

def _adj_accum_kernel(att_ref, adj_ref, sup_ref, o_ref):
    """Grid = (row_tiles, A).  Axis 1 (adjacency set) is the reduction axis.

    att_ref : SMEM [A]              scalar-prefetched attention weights
    adj_ref : VMEM [1, TM, N]       row tile of adj[i]
    sup_ref : VMEM [N, Cout_pad]    precomputed support (resident)
    o_ref   : VMEM [TM, Cout_pad]   resident accumulator / output tile (f32)
    """
    i = pl.program_id(1)
    y = jnp.dot(adj_ref[0], sup_ref[...],
                preferred_element_type=jnp.float32) * att_ref[i]

    @pl.when(i == 0)
    def _():
        o_ref[...] = y            # first adjacency: plain store, no zero-init RMW

    @pl.when(i > 0)
    def _():
        o_ref[...] += y

    @pl.when(i == pl.num_programs(1) - 1)
    def _():
        acc = o_ref[...]
        o_ref[...] = jnp.maximum(acc, 0.2 * acc)   # LeakyReLU(0.2)


def graph_conv(inputs, w, b, adj_set, att, *, matmul_dtype=jnp.float32):
    """GraphConv forward.

    inputs : [N, Cin] f32, w: [Cin, Cout], b: [Cout], adj_set: [A, N, N], att: [A].
    matmul_dtype: dtype used to stream adj/support (f32 or bf16); MXU
    accumulation stays f32 either way.
    """
    n, cin = inputs.shape
    cout = w.shape[1]
    a = adj_set.shape[0]

    # Lane-dense output: pad the out-channel axis to a multiple of 128.
    cout_pad = _round_up(cout, 128)
    w_pad = jnp.zeros((cin, cout_pad), jnp.float32).at[:, :cout].set(
        w.astype(jnp.float32))
    b_pad = jnp.zeros((1, cout_pad), jnp.float32).at[:, :cout].set(
        b.astype(jnp.float32))

    # support computed once; reused by every adjacency and every row tile.
    support = _compute_support(inputs.astype(jnp.float32), w_pad, b_pad,
                               matmul_dtype)
    adj_set = adj_set.astype(matmul_dtype)
    att = att.astype(jnp.float32)

    item = jnp.dtype(matmul_dtype).itemsize
    resident_bytes = 2 * n * cout_pad * item          # support (conservative 2x)
    tm = _pick_row_tile(n, adj_row_bytes=n * item,
                        out_row_bytes=cout_pad * 4,
                        resident_bytes=resident_bytes)
    grid = (n // tm if n % tm == 0 else 1, a)         # rows parallel, reduce last

    vmem_need = (2 * tm * n * item + resident_bytes + 2 * tm * cout_pad * 4)
    compiler_kwargs = dict(dimension_semantics=("parallel", "arbitrary"))
    if vmem_need > 24 * 1024 * 1024:
        compiler_kwargs["vmem_limit_bytes"] = int(
            min(vmem_need * 5 // 4, 60 * 1024 * 1024))

    cost = pl.CostEstimate(
        flops=2 * a * n * n * cout_pad + 2 * n * cin * cout_pad,
        transcendentals=0,
        bytes_accessed=(a * n * n * item           # adjacency stream (dominant)
                        + n * cout_pad * item      # support
                        + n * cout_pad * 4         # output
                        + n * cin * 4),            # inputs
    )

    out_pad = pl.pallas_call(
        _adj_accum_kernel,
        out_shape=jax.ShapeDtypeStruct((n, cout_pad), jnp.float32),
        grid_spec=pltpu.PrefetchScalarGridSpec(
            num_scalar_prefetch=1,                                   # att -> SMEM
            grid=grid,
            in_specs=[
                pl.BlockSpec((1, tm, n), lambda r, i, att_s: (i, r, 0)),   # adj tile
                pl.BlockSpec((n, cout_pad), lambda r, i, att_s: (0, 0)),   # support
            ],
            out_specs=pl.BlockSpec((tm, cout_pad), lambda r, i, att_s: (r, 0)),
        ),
        compiler_params=pltpu.CompilerParams(**compiler_kwargs),
        cost_estimate=cost,
    )(att, adj_set, support)

    return out_pad[:, :cout]


def graph_conv_ref(inputs, w, b, adj_set, att):
    """Pure-JAX reference mirroring the PyTorch forward literally."""
    support = inputs @ w + b
    outputs = None
    for i in range(adj_set.shape[0]):
        y = (adj_set[i] @ support) * att[i]
        outputs = y if outputs is None else outputs + y
    return jnp.where(outputs >= 0, outputs, 0.2 * outputs)


if __name__ == "__main__":
    key = jax.random.PRNGKey(0)
    k_x, k_w, k_adj, k_att = jax.random.split(key, 4)

    # Small synthetic shapes consistent with the module.
    N, Cin, Cout, A = 64, 32, 16, 3

    inputs = jax.random.normal(k_x, (N, Cin), dtype=jnp.float32)

    # xavier_uniform_-style init for w; zeros for b (matching __init__).
    bound = (6.0 / (Cin + Cout)) ** 0.5
    w = jax.random.uniform(k_w, (Cin, Cout), minval=-bound, maxval=bound,
                           dtype=jnp.float32)
    b = jnp.zeros((Cout,), dtype=jnp.float32)

    # Adjacency set: row-normalized random sparse-ish matrices with self loops.
    adj_raw = (jax.random.uniform(k_adj, (A, N, N)) > 0.7).astype(jnp.float32)
    adj_raw = adj_raw + jnp.eye(N)[None]
    adj_set = adj_raw / jnp.sum(adj_raw, axis=-1, keepdims=True)

    att = jax.random.uniform(k_att, (A,), dtype=jnp.float32)

    ref = graph_conv_ref(inputs, w, b, adj_set, att)

    # f32 path: tight tolerance.
    out = jax.block_until_ready(graph_conv(inputs, w, b, adj_set, att))
    assert out.shape == (N, Cout)
    err = jnp.max(jnp.abs(out - ref))
    assert jnp.allclose(out, ref, atol=1e-4, rtol=1e-4), f"f32 max err {err}"

    # bf16 streaming path (halves adjacency HBM traffic): looser tolerance.
    out_bf16 = jax.block_until_ready(
        graph_conv(inputs, w, b, adj_set, att, matmul_dtype=jnp.bfloat16))
    err_bf16 = jnp.max(jnp.abs(out_bf16 - ref))
    assert jnp.allclose(out_bf16, ref, atol=5e-2, rtol=5e-2), \
        f"bf16 max err {err_bf16}"

    print("KERNEL_OK")
</pallas_src>

<mosaic_0001>
module attributes {stable_mosaic.version = 11 : i64} {
  func.func @_support_kernel(%arg0: i32, %arg1: memref<64x32xf32, #tpu.memory_space<vmem>>, %arg2: memref<32x128xf32, #tpu.memory_space<vmem>>, %arg3: memref<1x128xf32, #tpu.memory_space<vmem>>, %arg4: memref<64x128xf32, #tpu.memory_space<vmem>>) attributes {dimension_semantics = [#tpu.dimension_semantics<parallel>], iteration_bounds = array<i64: 1>, scalar_prefetch = 0 : i64, scratch_operands = 0 : i64, tpu.core_type = #tpu.core_type<tc>, window_params = [{transform_indices = @transform_0, window_bounds = array<i64: 64, 32>}, {pipeline_mode = #tpu.pipeline_mode<synchronous>, transform_indices = @transform_1, window_bounds = array<i64: 32, 128>}, {pipeline_mode = #tpu.pipeline_mode<synchronous>, transform_indices = @transform_2, window_bounds = array<i64: 1, 128>}, {transform_indices = @transform_3, window_bounds = array<i64: 64, 128>}]} {
    %c0 = arith.constant 0 : index
    %c0_0 = arith.constant 0 : index
    %0 = vector.load %arg1[%c0, %c0_0] : memref<64x32xf32, #tpu.memory_space<vmem>>, vector<64x32xf32>
    %c0_1 = arith.constant 0 : index
    %c0_2 = arith.constant 0 : index
    %1 = vector.load %arg2[%c0_1, %c0_2] : memref<32x128xf32, #tpu.memory_space<vmem>>, vector<32x128xf32>
    %cst = arith.constant dense<0.000000e+00> : vector<64x128xf32>
    %2 = tpu.matmul %0, %1, %cst {dimension_numbers = #tpu.dot_dimension_numbers<[1], [0], [0], [1], [0, 0, 1, 1], [], []>} : vector<64x32xf32>, vector<32x128xf32>, vector<64x128xf32> -> vector<64x128xf32>
    %c0_3 = arith.constant 0 : index
    %c0_4 = arith.constant 0 : index
    %3 = vector.load %arg3[%c0_3, %c0_4] : memref<1x128xf32, #tpu.memory_space<vmem>>, vector<1x128xf32>
    %4 = vector.broadcast %3 : vector<1x128xf32> to vector<64x128xf32>
    %5 = arith.addf %2, %4 : vector<64x128xf32>
    %c0_5 = arith.constant 0 : index
    %c0_6 = arith.constant 0 : index
    %6 = vector.load %arg4[%c0_5, %c0_6] : memref<64x128xf32, #tpu.memory_space<vmem>>, vector<64x128xf32>
    tpu.vector_store %arg4[%c0_5, %c0_6], %5 {strides = array<i32>} : memref<64x128xf32, #tpu.memory_space<vmem>>, vector<64x128xf32>,
    return
  }
  func.func @transform_0(%arg0: i32) -> (i32, i32) {
    %c0_i32 = arith.constant 0 : i32
    %c0_i32_0 = arith.constant 0 : i32
    return %arg0, %c0_i32 : i32, i32
  }
  func.func @transform_1(%arg0: i32) -> (i32, i32) {
    %c0_i32 = arith.constant 0 : i32
    %c0_i32_0 = arith.constant 0 : i32
    %c0_i32_1 = arith.constant 0 : i32
    return %c0_i32, %c0_i32_0 : i32, i32
  }
  func.func @transform_2(%arg0: i32) -> (i32, i32) {
    %c0_i32 = arith.constant 0 : i32
    %c0_i32_0 = arith.constant 0 : i32
    %c0_i32_1 = arith.constant 0 : i32
    return %c0_i32, %c0_i32_0 : i32, i32
  }
  func.func @transform_3(%arg0: i32) -> (i32, i32) {
    %c0_i32 = arith.constant 0 : i32
    %c0_i32_0 = arith.constant 0 : i32
    return %arg0, %c0_i32 : i32, i32
  }
}

</mosaic_0001>

<llo_original>
// kernel: tpu_custom_call.1
$region0: #{tpu_custom_call.1}
  #allocation0 [shape = 'u32[]', space=smem, size = 0x4, offset = 0x4, fixed_abs, tag = 'smem constant byte address 0x4 - core index']
  #allocation1 [shape = 'u32[144,128]{1,0:T(1,128)}', space=vmem, size = 0x12000, scoped, tag = 'internal scratch']
  %s0 = inlined_call_operand.vmem [shape: f32[64,32], index: 0, kind: input, shape index: {}]
  %s1 = inlined_call_operand.vmem [shape: f32[32,128], index: 1, kind: input, shape index: {}]
  %s2 = inlined_call_operand.vmem [shape: f32[1,128], index: 2, kind: input, shape index: {}]
  %s3 = inlined_call_operand.hbm [shape: f32[64,128], index: 3, kind: output, shape index: {}]
  %s4 = sld [smem:[#allocation0]]
  $region22: #{tpu_custom_call.1} parent=0
    _
  %s6 = ssub.s32 1, %s4
  %s7 = scalar_select 0, %s6, %s4
  $region1: #{tpu_custom_call.1} parent=0
    #allocation2 [shape = 'u8[32768]{0}', space=vmem, size = 0x8000, scoped, tag = 'output window, operand 0, single buffered']
    #allocation3 [shape = 's32[1]{0}', space=sflag, size = 0x4, scoped, tag = 'scoped memory for tpu_custom_call.1']
    %8 = vsyncpa [#allocation3], 0
    // Predicated region
    $region2: #{tpu_custom_call.1} parent=1 // pred_check
      _
    $region3: #{tpu_custom_call.1} parent=1 // pred_check_branch
      %10 = sbr.rel (0) target = $region5
    $region4: #{tpu_custom_call.1} parent=1 // pred_region
      _
    $region5: #{tpu_custom_call.1} parent=1 // pred_fallthru
      _
    // Predicated region
    $region6: #{tpu_custom_call.1} parent=1 // pred_check
      _
    $region7: #{tpu_custom_call.1} parent=1 // pred_check_branch
      %12 = sbr.rel (0) target = $region9
    $region8: #{tpu_custom_call.1} parent=1 // pred_region
      _
    $region9: #{tpu_custom_call.1} parent=1 // pred_fallthru
      _
    // Predicated region
    $region10: #{tpu_custom_call.1} parent=1 // pred_check
      _
    $region11: #{tpu_custom_call.1} parent=1 // pred_check_branch
      %14 = sbr.rel (0) target = $region13
    $region12: #{tpu_custom_call.1} parent=1 // pred_region
      _
    $region13: #{tpu_custom_call.1} parent=1 // pred_fallthru
      _
    %v15 = vld [vmem:[%s0] sm:$0xff]
    %v16 = vld [vmem:[%s0 + $0x8] sm:$0xff]
    %v17 = vld [vmem:[%s0 + $0x10] sm:$0xff]
    %v18 = vld [vmem:[%s0 + $0x18] sm:$0xff]
    %v19 = vld [vmem:[%s0 + $0x20] sm:$0xff]
    %v20 = vld [vmem:[%s0 + $0x28] sm:$0xff]
    %v21 = vld [vmem:[%s0 + $0x30] sm:$0xff]
    %v22 = vld [vmem:[%s0 + $0x38] sm:$0xff]
    %v23 = vld [vmem:[%s1] sm:$0xff]
    %v24 = vld [vmem:[%s1 + $0x8] sm:$0xff]
    %v25 = vld [vmem:[%s1 + $0x10] sm:$0xff]
    %v26 = vld [vmem:[%s1 + $0x18] sm:$0xff]
    %v27 = vld [vmem:[%s2] sm:$0x1]
    %v29 = vlaneseq
    %v30 = vshrl.u32 %v29, 7
    %v31 = vsub.s32 0, %v30
    %v32 = vrot.slane %v27, %v31
    %vm34 = vcmask 261120
    %v36 = vsel %vm34, %v15, 0
    %v39 = vsel %vm34, %v16, 0
    %v42 = vsel %vm34, %v17, 0
    %v45 = vsel %vm34, %v18, 0
    %v48 = vsel %vm34, %v19, 0
    %v51 = vsel %vm34, %v20, 0
    %v54 = vsel %vm34, %v21, 0
    %v57 = vsel %vm34, %v22, 0
    %59 = vmatprep.subr.mxu0 0.0
    %60 = vmatpush1.msra.mxu0 0.0
    %61 = vmatprep.subr.mxu0 0.0
    %62 = vmatpush1.msra.mxu0 0.0
    %63 = vmatprep.subr.mxu0 0.0
    %64 = vmatpush1.msra.mxu0 0.0
    %65 = vmatprep.subr.mxu0 0.0
    %66 = vmatpush1.msra.mxu0 0.0
    %67 = vmatprep.subr.mxu0 0.0
    %68 = vmatpush1.msra.mxu0 0.0
    %69 = vmatprep.subr.mxu0 0.0
    %70 = vmatpush1.msra.mxu0 0.0
    %71 = vmatprep.subr.mxu0 0.0
    %72 = vmatpush1.msra.mxu0 0.0
    %73 = vmatprep.subr.mxu0 0.0
    %74 = vmatpush1.msra.mxu0 0.0
    %75 = vmatprep.subr.mxu0 0.0
    %76 = vmatpush1.msra.mxu0 0.0
    %77 = vmatprep.subr.mxu0 0.0
    %78 = vmatpush1.msra.mxu0 0.0
    %79 = vmatprep.subr.mxu0 0.0
    %80 = vmatpush1.msra.mxu0 0.0
    %81 = vmatprep.subr.mxu0 0.0
    %82 = vmatpush1.msra.mxu0 0.0
    %83 = vmatprep.subr.mxu0 0.0
    %84 = vmatpush1.msra.mxu0 %v26
    %85 = vmatprep.subr.mxu0 0.0
    %86 = vmatpush1.msra.mxu0 %v25
    %87 = vmatprep.subr.mxu0 0.0
    %88 = vmatpush1.msra.mxu0 %v24
    %89 = vmatprep.subr.mxu0 0.0
    %90 = vmatpush1.msra.mxu0 %v23
    %91 = vmatprep.subr.mxu0 0.0
    %92 = vmatpush2.msra.mxu0 0.0
    %93 = vmatprep.subr.mxu0 0.0
    %94 = vmatpush2.msra.mxu0 0.0
    %95 = vmatprep.subr.mxu0 0.0
    %96 = vmatpush2.msra.mxu0 0.0
    %97 = vmatprep.subr.mxu0 0.0
    %98 = vmatpush2.msra.mxu0 0.0
    %99 = vmatprep.subr.mxu0 0.0
    %100 = vmatpush2.msra.mxu0 0.0
    %101 = vmatprep.subr.mxu0 0.0
    %102 = vmatpush2.msra.mxu0 0.0
    %103 = vmatprep.subr.mxu0 0.0
    %104 = vmatpush2.msra.mxu0 0.0
    %105 = vmatprep.subr.mxu0 0.0
    %106 = vmatpush2.msra.mxu0 0.0
    %107 = vmatprep.subr.mxu0 0.0
    %108 = vmatpush2.msra.mxu0 0.0
    %109 = vmatprep.subr.mxu0 0.0
    %110 = vmatpush2.msra.mxu0 0.0
    %111 = vmatprep.subr.mxu0 0.0
    %112 = vmatpush2.msra.mxu0 0.0
    %113 = vmatprep.subr.mxu0 0.0
    %114 = vmatpush2.msra.mxu0 0.0
    %115 = vmatprep.subr.mxu0 0.0
    %116 = vmatpush2.msra.mxu0 0.0
    %117 = vmatprep.subr.mxu0 0.0
    %118 = vmatpush2.msra.mxu0 0.0
    %119 = vmatprep.subr.mxu0 0.0
    %120 = vmatpush2.msra.mxu0 0.0
    %121 = vmatprep.subr.mxu0 0.0
    %122 = vmatpush2.msra.mxu0 0.0
    %123 = vmatprep.mubr.f32.mxu0 0.0
    %124 = vmatmul.mubr.f32.gmra.mxu0 %v36
    %v125 = vpop.f32.mrf.mxu0
    %v126 = vadd.f32 %v32, %v125
    %v127 = vpop.f32.mrf.mxu0
    %128 = vmatprep.mubr.f32.mxu0 0.0
    %129 = vmatmul.mubr.f32.gmra.mxu0 %v39
    %v130 = vpop.f32.mrf.mxu0
    %v131 = vadd.f32 %v32, %v130
    %v132 = vpop.f32.mrf.mxu0
    %133 = vmatprep.mubr.f32.mxu0 0.0
    %134 = vmatmul.mubr.f32.gmra.mxu0 %v42
    %v135 = vpop.f32.mrf.mxu0
    %v136 = vadd.f32 %v32, %v135
    %v137 = vpop.f32.mrf.mxu0
    %138 = vmatprep.mubr.f32.mxu0 0.0
    %139 = vmatmul.mubr.f32.gmra.mxu0 %v45
    %v140 = vpop.f32.mrf.mxu0
    %v141 = vadd.f32 %v32, %v140
    %v142 = vpop.f32.mrf.mxu0
    %143 = vmatprep.mubr.f32.mxu0 0.0
    %144 = vmatmul.mubr.f32.gmra.mxu0 %v48
    %v145 = vpop.f32.mrf.mxu0
    %v146 = vadd.f32 %v32, %v145
    %v147 = vpop.f32.mrf.mxu0
    %148 = vmatprep.mubr.f32.mxu0 0.0
    %149 = vmatmul.mubr.f32.gmra.mxu0 %v51
    %v150 = vpop.f32.mrf.mxu0
    %v151 = vadd.f32 %v32, %v150
    %v152 = vpop.f32.mrf.mxu0
    %153 = vmatprep.mubr.f32.mxu0 0.0
    %154 = vmatmul.mubr.f32.gmra.mxu0 %v54
    %v155 = vpop.f32.mrf.mxu0
    %v156 = vadd.f32 %v32, %v155
    %v157 = vpop.f32.mrf.mxu0
    %158 = vmatprep.mubr.f32.mxu0 0.0
    %159 = vmatmul.mubr.f32.gmra.mxu0 %v57
    %v160 = vpop.f32.mrf.mxu0
    %v161 = vadd.f32 %v32, %v160
    %v162 = vpop.f32.mrf.mxu0
    %163 = vdwg.mxu0
    %164 = vst [vmem:[#allocation2] sm:$0xff] %v126
    %165 = vst [vmem:[#allocation2 + $0x8] sm:$0xff] %v131
    %166 = vst [vmem:[#allocation2 + $0x10] sm:$0xff] %v136
    %167 = vst [vmem:[#allocation2 + $0x18] sm:$0xff] %v141
    %168 = vst [vmem:[#allocation2 + $0x20] sm:$0xff] %v146
    %169 = vst [vmem:[#allocation2 + $0x28] sm:$0xff] %v151
    %170 = vst [vmem:[#allocation2 + $0x30] sm:$0xff] %v156
    %171 = vst [vmem:[#allocation2 + $0x38] sm:$0xff] %v161
    // Predicated region
    $region14: #{tpu_custom_call.1} parent=1 // pred_check
      _
    $region15: #{tpu_custom_call.1} parent=1 // pred_check_branch
      %173 = sbr.rel (0) target = $region17
    $region16: #{tpu_custom_call.1} parent=1 // pred_region
      %s175 = ssub.s32 1024, 1024
      %176 = vsyncadd [#allocation3], %s175
      %s177 = sshll.u32 [#allocation2], 4
      %s178 = int_to_ptr.vmem [resolvable:$true] %s177
      %183 = dma.vmem_to_hbm [thread:$0]  %s178, 1024, %s3, [#allocation3], 128, 128, 8
    $region17: #{tpu_custom_call.1} parent=1 // pred_fallthru
      _
    // Predicated region
    $region18: #{tpu_custom_call.1} parent=1 // pred_check
      _
    $region19: #{tpu_custom_call.1} parent=1 // pred_check_branch
      %185 = sbr.rel (0) target = $region21
    $region20: #{tpu_custom_call.1} parent=1 // pred_region
      %186 = dma.done [#allocation3], 1024
    $region21: #{tpu_custom_call.1} parent=1 // pred_fallthru
      _
    %187 = vsyncpa [#allocation3], 1

</llo_original>
